<compile_context>
chip_gen: v6e
topology: v6e:2x2x1
jax: 0.10.0
libtpu: 0.0.40
codegen_flags: <defaults>
</compile_context>

<pallas_src>
import functools

import jax
import jax.numpy as jnp
from jax.experimental import pallas as pl
from jax.experimental.pallas import tpu as pltpu


def _round_up(x, m):
    return (x + m - 1) // m * m


def _pick_tile_rows(width, itemsize, rows_cap):
    """Largest multiple-of-8 row tile with <= ~4 MiB per pipeline buffer."""
    budget = 4 * 1024 * 1024
    row_bytes = max(1, width * itemsize)
    tn = (budget // row_bytes) // 8 * 8
    tn = max(8, tn)
    tn = min(tn, _round_up(max(1, rows_cap), 8))
    return tn


def _bce_partial_kernel(x_ref, z_ref, o_ref, *, valid_rows, block_rows,
                        tiles_per_split, needs_mask):
    """One grid step = one (tn, W) row tile.

    x_ref: (tn, W) targets
    z_ref: (tn, W) logits
    o_ref: (1, 8, W) per-split partial-sum accumulator (resident across the
           inner "arbitrary" axis).
    """
    c = pl.program_id(0)
    t = pl.program_id(1)

    @pl.when(t == 0)
    def _():
        o_ref[...] = jnp.zeros_like(o_ref)

    x = x_ref[...].astype(jnp.float32)
    z = z_ref[...].astype(jnp.float32)

    # Numerically-stable BCE-with-logits, identical to PyTorch:
    #   loss = max(z, 0) - z*y + log(1 + exp(-|z|))
    loss = jnp.maximum(z, 0.0) - z * x + jnp.log1p(jnp.exp(-jnp.abs(z)))

    tn, w = loss.shape

    def _accumulate(vals):
        # Fold sublane groups only: (tn, W) -> (tn//8, 8, W), sum over groups.
        # Pure vreg-wise VPU adds; the single cross-lane reduce happens once
        # in the wrapper on the tiny (num_splits, 8, W) result.
        o_ref[0] = o_ref[0] + jnp.sum(vals.reshape(tn // 8, 8, w), axis=0)

    if not needs_mask:
        # Every tile lies fully inside the valid rows (static fact).
        _accumulate(loss)
    else:
        row_start = (c * tiles_per_split + t) * block_rows
        is_tail = row_start + block_rows > valid_rows

        @pl.when(jnp.logical_not(is_tail))
        def _():
            _accumulate(loss)

        @pl.when(is_tail)
        def _():
            # Mask rows beyond the valid range (OOB block contents are
            # unspecified; jnp.where selects 0 so NaN/Inf cannot leak in).
            rows = row_start + jax.lax.broadcasted_iota(jnp.int32, (tn, w), 0)
            _accumulate(jnp.where(rows < valid_rows, loss, 0.0))


def pretrain_loss_mda(ori_stack, rec_stack, hs=None, *, num_splits=1,
                      core_parallel=False):
    """ori_stack, rec_stack: (V, N, D) float arrays (f32 or bf16); hs unused.

    Returns scalar f32 equal to
        sum_v mean_n sum_d BCEWithLogits(rec[v], ori[v]).

    On v7x pass num_splits=2, core_parallel=True to shard the row stream
    across both TensorCores; leave defaults on single-TC chips (v5e/v6e).
    """
    V, N, D = ori_stack.shape
    assert rec_stack.shape == (V, N, D)

    E = V * N * D
    itemsize = max(jnp.dtype(ori_stack.dtype).itemsize,
                   jnp.dtype(rec_stack.dtype).itemsize)

    # Lane-dense presentation: BCE is elementwise and the reduction is over
    # everything, so a contiguous reshape is free.  Prefer a (E//128, 128)
    # slab when D is not lane-aligned; otherwise keep (V*N, D).
    if D % 128 == 0:
        R, W = V * N, D
    elif E % 128 == 0:
        R, W = E // 128, 128
    else:
        R, W = V * N, D     # partial lanes; correct, slightly lane-wasteful.

    x = ori_stack.reshape(R, W)
    z = rec_stack.reshape(R, W)

    num_splits = max(1, int(num_splits))
    rows_per_split = pl.cdiv(R, num_splits)
    tn = _pick_tile_rows(W, itemsize, rows_per_split)
    tiles_per_split = pl.cdiv(rows_per_split, tn)
    covered_rows = num_splits * tiles_per_split * tn
    needs_mask = covered_rows > R      # any ragged / fully-OOB tail tiles?

    kernel = functools.partial(
        _bce_partial_kernel,
        valid_rows=R, block_rows=tn,
        tiles_per_split=tiles_per_split, needs_mask=needs_mask)

    # VMEM budget: 2 inputs x 2 pipeline buffers x tile + output + slack.
    tile_bytes = tn * W * itemsize
    out_bytes = num_splits * 8 * W * 4
    vmem_limit = int(2 * 2 * tile_bytes + 2 * out_bytes + (6 << 20))

    cost = pl.CostEstimate(
        flops=7 * E,
        transcendentals=2 * E,
        bytes_accessed=2 * E * itemsize + out_bytes,
    )

    lead_sem = pltpu.CORE_PARALLEL if core_parallel else "parallel"

    out = pl.pallas_call(
        kernel,
        out_shape=jax.ShapeDtypeStruct((num_splits, 8, W), jnp.float32),
        grid_spec=pltpu.PrefetchScalarGridSpec(
            num_scalar_prefetch=0,
            grid=(num_splits, tiles_per_split),
            in_specs=[
                pl.BlockSpec((tn, W), lambda c, t: (c * tiles_per_split + t, 0)),
                pl.BlockSpec((tn, W), lambda c, t: (c * tiles_per_split + t, 0)),
            ],
            out_specs=pl.BlockSpec((1, 8, W), lambda c, t: (c, 0, 0)),
        ),
        compiler_params=pltpu.CompilerParams(
            dimension_semantics=(lead_sem, "arbitrary"),
            vmem_limit_bytes=vmem_limit,
        ),
        cost_estimate=cost,
    )(x, z)

    # Finalize: one cross-lane reduce over the tiny (num_splits, 8, W) partials
    # and the 1/N normalization (valid because every view shares batch size N).
    return jnp.sum(out) / jnp.float32(N)


def _reference(ori_stack, rec_stack, hs):
    z = rec_stack.astype(jnp.float32)
    x = ori_stack.astype(jnp.float32)
    loss = jnp.maximum(z, 0.0) - z * x + jnp.log1p(jnp.exp(-jnp.abs(z)))
    per_view = jnp.mean(jnp.sum(loss, axis=2), axis=1)
    return jnp.sum(per_view)  # + 0 * sum(hs) == identical for finite hs


if __name__ == "__main__":
    key = jax.random.PRNGKey(0)
    V, N = 7, 8   # 7 views (as in the PyTorch module), small batch

    def run_case(D, dtype, **kw):
        k1, k2, k3 = jax.random.split(jax.random.fold_in(key, D), 3)
        # Original inputs: multi-label-style targets in [0, 1].
        ori = jax.random.uniform(k1, (V, N, D), dtype=jnp.float32).astype(dtype)
        # Reconstruction logits come from the model with a trailing singleton
        # dim (the .squeeze() in the PyTorch forward); squeeze is glue.
        rec_raw = jax.random.normal(k2, (V, N, D, 1), dtype=jnp.float32).astype(dtype)
        rec = jnp.squeeze(rec_raw, axis=-1)
        # Hidden states hs: only ever appeared via 0 * sum(hs); unused here.
        hs = jax.random.normal(k3, (N, 32), dtype=jnp.float32)

        got = jax.block_until_ready(pretrain_loss_mda(ori, rec, hs, **kw))
        ref = _reference(ori, rec, hs)
        assert jnp.allclose(got, ref, rtol=1e-4, atol=1e-4), (D, dtype, got, ref)

    run_case(96, jnp.float32)                   # lane-dense flat slab + ragged tail mask
    run_case(96, jnp.float32, num_splits=2)     # split axis + masked tail tiles
    run_case(100, jnp.float32)                  # (R, D) path, D not lane-aligned
    run_case(128, jnp.float32)                  # D lane-aligned, no masking
    run_case(96, jnp.bfloat16)                  # bf16 storage (halved HBM bytes)

    print("KERNEL_OK")
</pallas_src>

<mosaic_0001>
module attributes {stable_mosaic.version = 11 : i64} {
  func.func @_bce_partial_kernel(%arg0: i32, %arg1: i32, %arg2: memref<48x128xf32, #tpu.memory_space<vmem>>, %arg3: memref<48x128xf32, #tpu.memory_space<vmem>>, %arg4: memref<1x8x128xf32, #tpu.memory_space<vmem>>) attributes {dimension_semantics = [#tpu.dimension_semantics<parallel>, #tpu.dimension_semantics<arbitrary>], iteration_bounds = array<i64: 1, 1>, scalar_prefetch = 0 : i64, scratch_operands = 0 : i64, tpu.core_type = #tpu.core_type<tc>, window_params = [{transform_indices = @transform_0, window_bounds = array<i64: 48, 128>}, {transform_indices = @transform_1, window_bounds = array<i64: 48, 128>}, {transform_indices = @transform_2, window_bounds = array<i64: 1, 8, 128>}]} {
    %c0_i32 = arith.constant 0 : i32
    %0 = arith.cmpi eq, %arg1, %c0_i32 : i32
    %1 = arith.extui %0 : i1 to i32
    %c0_i32_0 = arith.constant 0 : i32
    %2 = arith.cmpi ne, %1, %c0_i32_0 : i32
    scf.if %2 {
      %cst_8 = arith.constant 0.000000e+00 : f32
      %25 = vector.broadcast %cst_8 : f32 to vector<1x8x128xf32>
      %c0_9 = arith.constant 0 : index
      %c0_10 = arith.constant 0 : index
      %c0_11 = arith.constant 0 : index
      %26 = vector.load %arg4[%c0_9, %c0_10, %c0_11] : memref<1x8x128xf32, #tpu.memory_space<vmem>>, vector<1x8x128xf32>
      tpu.vector_store %arg4[%c0_9, %c0_10, %c0_11], %25 {strides = array<i32>} : memref<1x8x128xf32, #tpu.memory_space<vmem>>, vector<1x8x128xf32>,
    } else {
    }
    %c0 = arith.constant 0 : index
    %c0_1 = arith.constant 0 : index
    %3 = vector.load %arg2[%c0, %c0_1] : memref<48x128xf32, #tpu.memory_space<vmem>>, vector<48x128xf32>
    %c0_2 = arith.constant 0 : index
    %c0_3 = arith.constant 0 : index
    %4 = vector.load %arg3[%c0_2, %c0_3] : memref<48x128xf32, #tpu.memory_space<vmem>>, vector<48x128xf32>
    %cst = arith.constant 0.000000e+00 : f32
    %5 = vector.broadcast %cst : f32 to vector<48x128xf32>
    %6 = arith.maximumf %4, %5 : vector<48x128xf32>
    %7 = arith.mulf %4, %3 : vector<48x128xf32>
    %8 = arith.subf %6, %7 : vector<48x128xf32>
    %9 = math.absf %4 : vector<48x128xf32>
    %cst_4 = arith.constant 0.000000e+00 : f32
    %10 = vector.broadcast %cst_4 : f32 to vector<48x128xf32>
    %11 = arith.subf %10, %9 : vector<48x128xf32>
    %12 = math.exp %11 : vector<48x128xf32>
    %13 = math.log1p %12 : vector<48x128xf32>
    %14 = arith.addf %8, %13 : vector<48x128xf32>
    %c1_i32 = arith.constant 1 : i32
    %15 = arith.muli %arg0, %c1_i32 : i32
    %16 = arith.addi %15, %arg1 : i32
    %c48_i32 = arith.constant 48 : i32
    %17 = arith.muli %16, %c48_i32 : i32
    %c48_i32_5 = arith.constant 48 : i32
    %18 = arith.addi %17, %c48_i32_5 : i32
    %c42_i32 = arith.constant 42 : i32
    %19 = arith.cmpi sgt, %18, %c42_i32 : i32
    %true = arith.constant true
    %20 = arith.xori %19, %true : i1
    %21 = arith.extui %20 : i1 to i32
    %c0_i32_6 = arith.constant 0 : i32
    %22 = arith.cmpi ne, %21, %c0_i32_6 : i32
    scf.if %22 {
      %c0_8 = arith.constant 0 : index
      %c0_9 = arith.constant 0 : index
      %c0_10 = arith.constant 0 : index
      %25 = vector.load %arg4[%c0_8, %c0_9, %c0_10] : memref<1x8x128xf32, #tpu.memory_space<vmem>>, vector<1x8x128xf32>
      %26 = vector.shape_cast %25 : vector<1x8x128xf32> to vector<8x128xf32>
      %27 = vector.shape_cast %14 : vector<48x128xf32> to vector<6x8x128xf32>
      %cst_11 = arith.constant dense<0.000000e+00> : vector<8x128xf32>
      %28 = vector.multi_reduction <add>, %27, %cst_11 [0] : vector<6x8x128xf32> to vector<8x128xf32>
      %29 = arith.addf %26, %28 : vector<8x128xf32>
      %c0_12 = arith.constant 0 : index
      %c0_13 = arith.constant 0 : index
      %c0_14 = arith.constant 0 : index
      %30 = vector.load %arg4[%c0_12, %c0_13, %c0_14] : memref<1x8x128xf32, #tpu.memory_space<vmem>>, vector<1x8x128xf32>
      %31 = vector.shape_cast %30 : vector<1x8x128xf32> to vector<8x128xf32>
      %32 = vector.shape_cast %29 : vector<8x128xf32> to vector<1x8x128xf32>
      tpu.vector_store %arg4[%c0_12, %c0_13, %c0_14], %32 {strides = array<i32>} : memref<1x8x128xf32, #tpu.memory_space<vmem>>, vector<1x8x128xf32>,
    } else {
    }
    %23 = arith.extui %19 : i1 to i32
    %c0_i32_7 = arith.constant 0 : i32
    %24 = arith.cmpi ne, %23, %c0_i32_7 : i32
    scf.if %24 {
      %25 = tpu.iota {dimensions = array<i32: 0>} : vector<48x128xi32>
      %26 = vector.broadcast %17 : i32 to vector<48x128xi32>
      %27 = arith.addi %26, %25 : vector<48x128xi32>
      %c42_i32_8 = arith.constant 42 : i32
      %28 = vector.broadcast %c42_i32_8 : i32 to vector<48x128xi32>
      %29 = arith.cmpi slt, %27, %28 : vector<48x128xi32>
      %cst_9 = arith.constant 0.000000e+00 : f32
      %30 = vector.broadcast %cst_9 : f32 to vector<48x128xf32>
      %31 = arith.select %29, %14, %30 : vector<48x128xi1>, vector<48x128xf32>
      %c0_10 = arith.constant 0 : index
      %c0_11 = arith.constant 0 : index
      %c0_12 = arith.constant 0 : index
      %32 = vector.load %arg4[%c0_10, %c0_11, %c0_12] : memref<1x8x128xf32, #tpu.memory_space<vmem>>, vector<1x8x128xf32>
      %33 = vector.shape_cast %32 : vector<1x8x128xf32> to vector<8x128xf32>
      %34 = vector.shape_cast %31 : vector<48x128xf32> to vector<6x8x128xf32>
      %cst_13 = arith.constant dense<0.000000e+00> : vector<8x128xf32>
      %35 = vector.multi_reduction <add>, %34, %cst_13 [0] : vector<6x8x128xf32> to vector<8x128xf32>
      %36 = arith.addf %33, %35 : vector<8x128xf32>
      %c0_14 = arith.constant 0 : index
      %c0_15 = arith.constant 0 : index
      %c0_16 = arith.constant 0 : index
      %37 = vector.load %arg4[%c0_14, %c0_15, %c0_16] : memref<1x8x128xf32, #tpu.memory_space<vmem>>, vector<1x8x128xf32>
      %38 = vector.shape_cast %37 : vector<1x8x128xf32> to vector<8x128xf32>
      %39 = vector.shape_cast %36 : vector<8x128xf32> to vector<1x8x128xf32>
      tpu.vector_store %arg4[%c0_14, %c0_15, %c0_16], %39 {strides = array<i32>} : memref<1x8x128xf32, #tpu.memory_space<vmem>>, vector<1x8x128xf32>,
    } else {
    }
    return
  }
  func.func @transform_0(%arg0: i32, %arg1: i32) -> (i32, i32) {
    %c1_i32 = arith.constant 1 : i32
    %0 = arith.muli %arg0, %c1_i32 : i32
    %1 = arith.addi %0, %arg1 : i32
    %c0_i32 = arith.constant 0 : i32
    %c0_i32_0 = arith.constant 0 : i32
    return %1, %c0_i32 : i32, i32
  }
  func.func @transform_1(%arg0: i32, %arg1: i32) -> (i32, i32) {
    %c1_i32 = arith.constant 1 : i32
    %0 = arith.muli %arg0, %c1_i32 : i32
    %1 = arith.addi %0, %arg1 : i32
    %c0_i32 = arith.constant 0 : i32
    %c0_i32_0 = arith.constant 0 : i32
    return %1, %c0_i32 : i32, i32
  }
  func.func @transform_2(%arg0: i32, %arg1: i32) -> (i32, i32, i32) {
    %c0_i32 = arith.constant 0 : i32
    %c0_i32_0 = arith.constant 0 : i32
    %c0_i32_1 = arith.constant 0 : i32
    return %arg0, %c0_i32, %c0_i32_0 : i32, i32, i32
  }
}

</mosaic_0001>

<llo_original>
// kernel: tpu_custom_call.1
$region0: #{tpu_custom_call.1}
  #allocation0 [shape = 'u32[]', space=smem, size = 0x4, offset = 0x4, fixed_abs, tag = 'smem constant byte address 0x4 - core index']
  #allocation1 [shape = 'u32[144,128]{1,0:T(1,128)}', space=vmem, size = 0x12000, scoped, tag = 'internal scratch']
  %s0 = inlined_call_operand.hbm [shape: f32[42,128], index: 0, kind: input, shape index: {}]
  %s1 = inlined_call_operand.hbm [shape: f32[42,128], index: 1, kind: input, shape index: {}]
  %s2 = inlined_call_operand.hbm [shape: f32[1,8,128], index: 2, kind: output, shape index: {}]
  %s3 = sld [smem:[#allocation0]]
  $region38: #{tpu_custom_call.1} parent=0
    _
  %s5 = ssub.s32 1, %s3
  %s6 = scalar_select 0, %s5, %s3
  $region1: #{tpu_custom_call.1} parent=0
    #allocation2 [shape = 'u8[24576]{0}', space=vmem, size = 0x6000, scoped, tag = 'input window, operand 0, single buffered']
    #allocation3 [shape = 's32[1]{0}', space=sflag, size = 0x4, scoped, tag = 'scoped memory for tpu_custom_call.1']
    #allocation4 [shape = 's32[1]{0}', space=sflag, size = 0x4, scoped, tag = 'scoped memory for tpu_custom_call.1']
    #allocation5 [shape = 'u8[24576]{0}', space=vmem, size = 0x6000, scoped, tag = 'input window, operand 1, single buffered']
    #allocation6 [shape = 's32[1]{0}', space=sflag, size = 0x4, scoped, tag = 'scoped memory for tpu_custom_call.1']
    #allocation7 [shape = 'u8[4096]{0}', space=vmem, size = 0x1000, scoped, tag = 'output window, operand 0, single buffered']
    %7 = vsyncpa [#allocation3], 0
    %8 = vsyncpa [#allocation6], 0
    %9 = vsyncpa [#allocation4], 0
    // Predicated region
    $region2: #{tpu_custom_call.1} parent=1 // pred_check
      _
    $region3: #{tpu_custom_call.1} parent=1 // pred_check_branch
      %11 = sbr.rel (0) target = $region5
    $region4: #{tpu_custom_call.1} parent=1 // pred_region
      %s12 = sadd.s32 0, 0
      %s13 = smul.u32 6, %s12
      %s15 = ssub.s32 768, 768
      %16 = vsyncadd [#allocation3], %s15
      %s17 = smul.addr %s13, 128
      %s18 = scalar_lea.hbm %s0, %s17
      %s19 = sshll.u32 [#allocation2], 4
      %s20 = int_to_ptr.vmem [resolvable:$true] %s19
      %25 = dma.hbm_to_vmem [thread:$0]  %s18, 768, %s20, [#allocation3], 128, 128, 8
    $region5: #{tpu_custom_call.1} parent=1 // pred_fallthru
      _
    // Predicated region
    $region6: #{tpu_custom_call.1} parent=1 // pred_check
      _
    $region7: #{tpu_custom_call.1} parent=1 // pred_check_branch
      %27 = sbr.rel (0) target = $region9
    $region8: #{tpu_custom_call.1} parent=1 // pred_region
      %s28 = sadd.s32 0, 0
      %s29 = smul.u32 6, %s28
      %s31 = ssub.s32 768, 768
      %32 = vsyncadd [#allocation6], %s31
      %s33 = smul.addr %s29, 128
      %s34 = scalar_lea.hbm %s1, %s33
      %s35 = sshll.u32 [#allocation5], 4
      %s36 = int_to_ptr.vmem [resolvable:$true] %s35
      %41 = dma.hbm_to_vmem [thread:$0]  %s34, 768, %s36, [#allocation6], 128, 128, 8
    $region9: #{tpu_custom_call.1} parent=1 // pred_fallthru
      _
    // Predicated region
    $region10: #{tpu_custom_call.1} parent=1 // pred_check
      _
    $region11: #{tpu_custom_call.1} parent=1 // pred_check_branch
      %43 = sbr.rel (0) target = $region13
    $region12: #{tpu_custom_call.1} parent=1 // pred_region
      %44 = dma.done [#allocation3], 768
    $region13: #{tpu_custom_call.1} parent=1 // pred_fallthru
      _
    // Predicated region
    $region14: #{tpu_custom_call.1} parent=1 // pred_check
      _
    $region15: #{tpu_custom_call.1} parent=1 // pred_check_branch
      %46 = sbr.rel (0) target = $region17
    $region16: #{tpu_custom_call.1} parent=1 // pred_region
      %47 = dma.done [#allocation6], 768
    $region17: #{tpu_custom_call.1} parent=1 // pred_fallthru
      _
    %s48 = sadd.s32 0, 0
    %s49 = smul.u32 6, %s48
    %s50 = sadd.s32 0, 0
    %s51 = smul.u32 6, %s50
    %p52 = scmp.eq.s32.totalorder 0, 0
    // Predicated region
    $region18: #{tpu_custom_call.1} parent=1 // pred_check
      %p53 = pneg %p52
    $region19: #{tpu_custom_call.1} parent=1 // pred_check_branch
      %55 = sbr.rel (%p53) target = $region21
    $region20: #{tpu_custom_call.1} parent=1 // pred_region
      %56 = vst [vmem:[#allocation7] sm:$0xff] 0.0
    $region21: #{tpu_custom_call.1} parent=1 // pred_fallthru
      _
    %v57 = vld [vmem:[#allocation2] sm:$0xff]
    %v58 = vld [vmem:[#allocation2 + $0x8] sm:$0xff]
    %v59 = vld [vmem:[#allocation2 + $0x10] sm:$0xff]
    %v60 = vld [vmem:[#allocation2 + $0x18] sm:$0xff]
    %v61 = vld [vmem:[#allocation2 + $0x20] sm:$0xff]
    %v62 = vld [vmem:[#allocation2 + $0x28] sm:$0xff]
    %v63 = vld [vmem:[#allocation5] sm:$0xff]
    %v64 = vld [vmem:[#allocation5 + $0x8] sm:$0xff]
    %v65 = vld [vmem:[#allocation5 + $0x10] sm:$0xff]
    %v66 = vld [vmem:[#allocation5 + $0x18] sm:$0xff]
    %v67 = vld [vmem:[#allocation5 + $0x20] sm:$0xff]
    %v68 = vld [vmem:[#allocation5 + $0x28] sm:$0xff]
    %v69 = vmax.f32 %v63, 0.0
    %v70 = vmax.f32 %v64, 0.0
    %v71 = vmax.f32 %v65, 0.0
    %v72 = vmax.f32 %v66, 0.0
    %v73 = vmax.f32 %v67, 0.0
    %v74 = vmax.f32 %v68, 0.0
    %v75 = vmul.f32 %v63, %v57
    %v76 = vmul.f32 %v64, %v58
    %v77 = vmul.f32 %v65, %v59
    %v78 = vmul.f32 %v66, %v60
    %v79 = vmul.f32 %v67, %v61
    %v80 = vmul.f32 %v68, %v62
    %v81 = vsub.f32 %v69, %v75
    %v82 = vsub.f32 %v70, %v76
    %v83 = vsub.f32 %v71, %v77
    %v84 = vsub.f32 %v72, %v78
    %v85 = vsub.f32 %v73, %v79
    %v86 = vsub.f32 %v74, %v80
    %v87 = vand.u32 2147483647, %v63
    %v88 = vand.u32 2147483647, %v64
    %v89 = vand.u32 2147483647, %v65
    %v90 = vand.u32 2147483647, %v66
    %v91 = vand.u32 2147483647, %v67
    %v92 = vand.u32 2147483647, %v68
    %v93 = vsub.f32 0.0, %v87
    %v94 = vsub.f32 0.0, %v88
    %v95 = vsub.f32 0.0, %v89
    %v96 = vsub.f32 0.0, %v90
    %v97 = vsub.f32 0.0, %v91
    %v98 = vsub.f32 0.0, %v92
    %v99 = vmul.f32 %v93, 1.442695
    %v100 = vpow.pop %v99
    %v101 = vmul.f32 %v94, 1.442695
    %v102 = vpow.pop %v101
    %v103 = vmul.f32 %v95, 1.442695
    %v104 = vpow.pop %v103
    %v105 = vmul.f32 %v96, 1.442695
    %v106 = vpow.pop %v105
    %v107 = vmul.f32 %v97, 1.442695
    %v108 = vpow.pop %v107
    %v109 = vmul.f32 %v98, 1.442695
    %v110 = vpow.pop %v109
    %v111 = vadd.f32 %v100, 1.0
    %v112 = vlog2.pop %v111
    %v113 = vmul.f32 %v112, 0.6931472
    %v114 = vmul.f32 -0.5, %v100
    %v115 = vadd.f32 %v114, 1.0
    %v116 = vmul.f32 %v115, %v100
    %v117 = vand.u32 2147483647, %v100
    %vm118 = vcmp.lt.f32.partialorder %v117, 0.0004427343
    %v119 = vsel %vm118, %v116, %v113
    %v120 = vadd.f32 %v102, 1.0
    %v121 = vlog2.pop %v120
    %v122 = vmul.f32 %v121, 0.6931472
    %v123 = vmul.f32 -0.5, %v102
    %v124 = vadd.f32 %v123, 1.0
    %v125 = vmul.f32 %v124, %v102
    %v126 = vand.u32 2147483647, %v102
    %vm127 = vcmp.lt.f32.partialorder %v126, 0.0004427343
    %v128 = vsel %vm127, %v125, %v122
    %v129 = vadd.f32 %v104, 1.0
    %v130 = vlog2.pop %v129
    %v131 = vmul.f32 %v130, 0.6931472
    %v132 = vmul.f32 -0.5, %v104
    %v133 = vadd.f32 %v132, 1.0
    %v134 = vmul.f32 %v133, %v104
    %v135 = vand.u32 2147483647, %v104
    %vm136 = vcmp.lt.f32.partialorder %v135, 0.0004427343
    %v137 = vsel %vm136, %v134, %v131
    %v138 = vadd.f32 %v106, 1.0
    %v139 = vlog2.pop %v138
    %v140 = vmul.f32 %v139, 0.6931472
    %v141 = vmul.f32 -0.5, %v106
    %v142 = vadd.f32 %v141, 1.0
    %v143 = vmul.f32 %v142, %v106
    %v144 = vand.u32 2147483647, %v106
    %vm145 = vcmp.lt.f32.partialorder %v144, 0.0004427343
    %v146 = vsel %vm145, %v143, %v140
    %v147 = vadd.f32 %v108, 1.0
    %v148 = vlog2.pop %v147
    %v149 = vmul.f32 %v148, 0.6931472
    %v150 = vmul.f32 -0.5, %v108
    %v151 = vadd.f32 %v150, 1.0
    %v152 = vmul.f32 %v151, %v108
    %v153 = vand.u32 2147483647, %v108
    %vm154 = vcmp.lt.f32.partialorder %v153, 0.0004427343
    %v155 = vsel %vm154, %v152, %v149
    %v156 = vadd.f32 %v110, 1.0
    %v157 = vlog2.pop %v156
    %v158 = vmul.f32 %v157, 0.6931472
    %v159 = vmul.f32 -0.5, %v110
    %v160 = vadd.f32 %v159, 1.0
    %v161 = vmul.f32 %v160, %v110
    %v162 = vand.u32 2147483647, %v110
    %vm163 = vcmp.lt.f32.partialorder %v162, 0.0004427343
    %v164 = vsel %vm163, %v161, %v158
    %v165 = vadd.f32 %v81, %v119
    %v166 = vadd.f32 %v82, %v128
    %v167 = vadd.f32 %v83, %v137
    %v168 = vadd.f32 %v84, %v146
    %v169 = vadd.f32 %v85, %v155
    %v170 = vadd.f32 %v86, %v164
    %s171 = sadd.s32 0, 0
    %s172 = smul.u32 %s171, 48
    %s173 = sadd.s32 %s172, 48
    %p174 = scmp.gt.s32.totalorder %s173, 42
    %p175 = scmp.le.s32.totalorder %s173, 42
    // Predicated region
    $region22: #{tpu_custom_call.1} parent=1 // pred_check
      %p176 = pneg %p175
    $region23: #{tpu_custom_call.1} parent=1 // pred_check_branch
      %178 = sbr.rel (%p176) target = $region25
    $region24: #{tpu_custom_call.1} parent=1 // pred_region
      %v179 = vld [vmem:[#allocation7] sm:$0xff]
      %v180 = vadd.f32 %v165, %v166
      %v181 = vadd.f32 %v180, %v167
      %v182 = vadd.f32 %v181, %v168
      %v183 = vadd.f32 %v182, %v169
      %v184 = vadd.f32 %v183, %v170
      %v185 = vadd.f32 %v179, %v184
      %186 = vst [vmem:[#allocation7] sm:$0xff] %v185
    $region25: #{tpu_custom_call.1} parent=1 // pred_fallthru
      _
    // Predicated region
    $region26: #{tpu_custom_call.1} parent=1 // pred_check
      %p187 = pneg %p174
    $region27: #{tpu_custom_call.1} parent=1 // pred_check_branch
      %189 = sbr.rel (%p187) target = $region29
    $region28: #{tpu_custom_call.1} parent=1 // pred_region
      %v190 = vlaneseq
      %v191 = vshrl.u32 %v190, 7
      %v192 = vadd.s32 %v191, 8
      %v193 = vadd.s32 %v191, 16
      %v194 = vadd.s32 %v191, 24
      %v195 = vadd.s32 %v191, 32
      %v196 = vadd.s32 %v191, 40
      %v197 = vstv %s172
      %v198 = vadd.s32 %v197, %v191
      %v199 = vadd.s32 %v197, %v192
      %v200 = vadd.s32 %v197, %v193
      %v201 = vadd.s32 %v197, %v194
      %v202 = vadd.s32 %v197, %v195
      %v203 = vadd.s32 %v197, %v196
      %vm204 = vcmp.lt.s32.totalorder %v198, 42
      %vm205 = vcmp.lt.s32.totalorder %v199, 42
      %vm206 = vcmp.lt.s32.totalorder %v200, 42
      %vm207 = vcmp.lt.s32.totalorder %v201, 42
      %vm208 = vcmp.lt.s32.totalorder %v202, 42
      %vm209 = vcmp.lt.s32.totalorder %v203, 42
      %v210 = vsel %vm204, %v165, 0.0
      %v211 = vsel %vm205, %v166, 0.0
      %v212 = vsel %vm206, %v167, 0.0
      %v213 = vsel %vm207, %v168, 0.0
      %v214 = vsel %vm208, %v169, 0.0
      %v215 = vsel %vm209, %v170, 0.0
      %v216 = vld [vmem:[#allocation7] sm:$0xff]
      %v217 = vadd.f32 %v210, %v211
      %v218 = vadd.f32 %v217, %v212
      %v219 = vadd.f32 %v218, %v213
      %v220 = vadd.f32 %v219, %v214
      %v221 = vadd.f32 %v220, %v215
      %v222 = vadd.f32 %v216, %v221
      %223 = vst [vmem:[#allocation7] sm:$0xff] %v222
    $region29: #{tpu_custom_call.1} parent=1 // pred_fallthru
      _
    // Predicated region
    $region30: #{tpu_custom_call.1} parent=1 // pred_check
      _
    $region31: #{tpu_custom_call.1} parent=1 // pred_check_branch
      %225 = sbr.rel (0) target = $region33
    $region32: #{tpu_custom_call.1} parent=1 // pred_region
      %s227 = ssub.s32 128, 128
      %228 = vsyncadd [#allocation4], %s227
      %s230 = sshll.u32 [#allocation7], 4
      %s231 = int_to_ptr.vmem [resolvable:$true] %s230
      %233 = dma.vmem_to_hbm [thread:$0]  %s231, 128, %s2, [#allocation4]
    $region33: #{tpu_custom_call.1} parent=1 // pred_fallthru
      _
    // Predicated region
    $region34: #{tpu_custom_call.1} parent=1 // pred_check
      _
    $region35: #{tpu_custom_call.1} parent=1 // pred_check_branch
      %235 = sbr.rel (0) target = $region37
    $region36: #{tpu_custom_call.1} parent=1 // pred_region
      %236 = dma.done [#allocation4], 128
    $region37: #{tpu_custom_call.1} parent=1 // pred_fallthru
      _
    %237 = vsyncpa [#allocation3], 1
    %238 = vsyncpa [#allocation6], 1
    %239 = vsyncpa [#allocation4], 1

</llo_original>
